<compile_context>
chip_gen: v7x
topology: tpu7x:2x2x1
jax: 0.10.0
libtpu: 0.0.40
codegen_flags: <defaults>
</compile_context>

<pallas_src>
import jax
import jax.numpy as jnp
import numpy as np
from jax.experimental import pallas as pl
from jax.experimental.pallas import tpu as pltpu


# Keep each tile (double-buffered in + out ~= 4x resident) comfortably inside
# v7x's 32 MiB scoped / 64 MiB physical VMEM budget.
_MAX_TILE_BYTES = 4 * 1024 * 1024


def _copy_kernel(links_ref, out_ref):
    # forward(*_) -> self.links : pure pass-through of the binary linkage.
    out_ref[...] = links_ref[...]


def binary_links_forward(links: jax.Array, *_unused) -> jax.Array:
    """Preferred path: BinaryLinks.forward is a pure pass-through.

    Any positional inputs (membership degrees etc.) are accepted and ignored,
    matching the PyTorch signature `forward(self, *_)`.  No Pallas call, no
    DMA, no launch overhead — this is the optimal implementation on every TPU
    generation.
    """
    return links


def binary_links_materialize(links: jax.Array) -> jax.Array:
    """Pallas pass-through kernel (kept for API / fusion reasons).

    Aliases the output onto the input buffer and, for large rule bases, tiles
    the copy over the premise-term axis with HBM-bandwidth-friendly blocks.
    """
    n_terms, n_rules = links.shape
    itemsize = jnp.dtype(links.dtype).itemsize
    row_bytes = n_rules * itemsize

    # Largest row-tile that fits the per-tile VMEM budget (at least 32 rows
    # so int8 sublane packing stays aligned).
    max_rows = max(_MAX_TILE_BYTES // row_bytes, 32)

    if n_terms <= max_rows:
        # Small links: single full-array block, grid of 1 (minimizes the
        # ~0.35 us per-grid-step overhead; best choice on v5e especially).
        return pl.pallas_call(
            _copy_kernel,
            out_shape=jax.ShapeDtypeStruct((n_terms, n_rules), links.dtype),
            in_specs=[pl.BlockSpec((n_terms, n_rules), lambda: (0, 0))],
            out_specs=pl.BlockSpec((n_terms, n_rules), lambda: (0, 0)),
            input_output_aliases={0: 0},
        )(links)

    # Large links: 1-D grid over rows with big int8-aligned, lane-dense tiles.
    tile_t = (max_rows // 32) * 32
    grid = (pl.cdiv(n_terms, tile_t),)
    return pl.pallas_call(
        _copy_kernel,
        out_shape=jax.ShapeDtypeStruct((n_terms, n_rules), links.dtype),
        grid=grid,
        in_specs=[pl.BlockSpec((tile_t, n_rules), lambda i: (i, 0))],
        out_specs=pl.BlockSpec((tile_t, n_rules), lambda i: (i, 0)),
        input_output_aliases={0: 0},
        compiler_params=pltpu.CompilerParams(
            dimension_semantics=("parallel",)
        ),
    )(links)


if __name__ == "__main__":
    key = jax.random.PRNGKey(0)

    # Deterministic synthetic binary linkage matrix: 32 premise terms linked
    # to 128 rules (aligned to the int8 (32, 128) VMEM tile).
    n_terms, n_rules = 32, 128
    links = (jax.random.uniform(key, (n_terms, n_rules)) > 0.5).astype(jnp.int8)

    # Host-side reference copy (independent of any aliasing in the kernel).
    expected = np.asarray(links)

    # Dummy "membership degrees": forward ignores them, just like torch; they
    # are never passed into any pallas_call / jit.
    dummy_memberships = jax.random.normal(
        jax.random.PRNGKey(1), (2, n_terms), dtype=jnp.float32
    )

    # Preferred zero-overhead path.
    out_fast = binary_links_forward(links, dummy_memberships)
    out_fast = jax.block_until_ready(out_fast)

    # Explicit Pallas pass-through path.
    out_pallas = binary_links_materialize(links)
    out_pallas = jax.block_until_ready(out_pallas)

    assert out_fast.dtype == jnp.int8 and out_fast.shape == (n_terms, n_rules)
    assert out_pallas.dtype == jnp.int8 and out_pallas.shape == (n_terms, n_rules)
    assert bool(jnp.all(out_fast == expected))
    assert bool(jnp.all(out_pallas == expected))

    print("KERNEL_OK")
</pallas_src>

<mosaic_0001>
module attributes {stable_mosaic.version = 11 : i64} {
  func.func @_copy_kernel(%arg0: memref<32x128xi8, #tpu.memory_space<vmem>>, %arg1: memref<32x128xi8, #tpu.memory_space<vmem>>) attributes {dimension_semantics = [], scalar_prefetch = 0 : i64, scratch_operands = 0 : i64, tpu.core_type = #tpu.core_type<tc>} {
    %c0 = arith.constant 0 : index
    %c0_0 = arith.constant 0 : index
    %0 = vector.load %arg0[%c0, %c0_0] : memref<32x128xi8, #tpu.memory_space<vmem>>, vector<32x128xi8>
    %c0_1 = arith.constant 0 : index
    %c0_2 = arith.constant 0 : index
    %1 = vector.load %arg1[%c0_1, %c0_2] : memref<32x128xi8, #tpu.memory_space<vmem>>, vector<32x128xi8>
    tpu.vector_store %arg1[%c0_1, %c0_2], %0 {strides = array<i32>} : memref<32x128xi8, #tpu.memory_space<vmem>>, vector<32x128xi8>,
    return
  }
}

</mosaic_0001>

<llo_original>
// kernel: tpu_custom_call.1
$region0: #{tpu_custom_call.1}
  #allocation0 [shape = 'u32[]', space=smem, size = 0x4, offset = 0x4, fixed_abs, tag = 'smem constant byte address 0x4 - core index']
  #allocation1 [shape = 'u32[144,128]{1,0:T(1,128)}', space=vmem, size = 0x12000, scoped, tag = 'internal scratch']
  %s0 = inlined_call_operand.hbm [shape: s8[32,128], index: 0, kind: input, shape index: {}, may-alias: {0,1}]
  %s1 = inlined_call_operand.hbm [shape: s8[32,128], index: 1, kind: output, shape index: {}, may-alias: {0,1}]
  %s2 = sld [smem:[#allocation0]]
  $region18: #{tpu_custom_call.1} parent=0
    _
  %s4 = ssub.s32 1, %s2
  %s5 = scalar_select 0, %s4, %s2
  $region1: #{tpu_custom_call.1} parent=0
    #allocation2 [shape = 'u8[4096]{0}', space=vmem, size = 0x1000, scoped, tag = 'input window, operand 0, single buffered']
    #allocation3 [shape = 's32[1]{0}', space=sflag, size = 0x4, scoped, tag = 'scoped memory for tpu_custom_call.1']
    #allocation4 [shape = 's32[1]{0}', space=sflag, size = 0x4, scoped, tag = 'scoped memory for tpu_custom_call.1']
    #allocation5 [shape = 'u8[4096]{0}', space=vmem, size = 0x1000, scoped, tag = 'output window, operand 0, single buffered']
    %6 = vsyncpa [#allocation3], 0
    %7 = vsyncpa [#allocation4], 0
    // Predicated region
    $region2: #{tpu_custom_call.1} parent=1 // pred_check
      _
    $region3: #{tpu_custom_call.1} parent=1 // pred_check_branch
      %9 = sbr.rel (0) target = $region5
    $region4: #{tpu_custom_call.1} parent=1 // pred_region
      %s11 = ssub.s32 128, 128
      %12 = vsyncadd [#allocation3], %s11
      %s14 = sshll.u32 [#allocation2], 4
      %s15 = int_to_ptr.vmem [resolvable:$true] %s14
      %17 = dma.hbm_to_vmem [thread:$0]  %s0, 128, %s15, [#allocation3]
    $region5: #{tpu_custom_call.1} parent=1 // pred_fallthru
      _
    // Predicated region
    $region6: #{tpu_custom_call.1} parent=1 // pred_check
      _
    $region7: #{tpu_custom_call.1} parent=1 // pred_check_branch
      %19 = sbr.rel (0) target = $region9
    $region8: #{tpu_custom_call.1} parent=1 // pred_region
      %20 = dma.done [#allocation3], 128
    $region9: #{tpu_custom_call.1} parent=1 // pred_fallthru
      _
    %v21 = vld [vmem:[#allocation2] sm:$0xff]
    %22 = vst [vmem:[#allocation5] sm:$0xff] %v21
    // Predicated region
    $region10: #{tpu_custom_call.1} parent=1 // pred_check
      _
    $region11: #{tpu_custom_call.1} parent=1 // pred_check_branch
      %24 = sbr.rel (0) target = $region13
    $region12: #{tpu_custom_call.1} parent=1 // pred_region
      %s26 = ssub.s32 128, 128
      %27 = vsyncadd [#allocation4], %s26
      %s29 = sshll.u32 [#allocation5], 4
      %s30 = int_to_ptr.vmem [resolvable:$true] %s29
      %32 = dma.vmem_to_hbm [thread:$0]  %s30, 128, %s1, [#allocation4]
    $region13: #{tpu_custom_call.1} parent=1 // pred_fallthru
      _
    // Predicated region
    $region14: #{tpu_custom_call.1} parent=1 // pred_check
      _
    $region15: #{tpu_custom_call.1} parent=1 // pred_check_branch
      %34 = sbr.rel (0) target = $region17
    $region16: #{tpu_custom_call.1} parent=1 // pred_region
      %35 = dma.done [#allocation4], 128
    $region17: #{tpu_custom_call.1} parent=1 // pred_fallthru
      _
    %36 = vsyncpa [#allocation3], 1
    %37 = vsyncpa [#allocation4], 1

</llo_original>
